<compile_context>
chip_gen: v6e
topology: v6e:2x2x1
jax: 0.10.0
libtpu: 0.0.40
codegen_flags: <defaults>
</compile_context>

<pallas_src>
import jax
import jax.numpy as jnp
from jax.experimental import pallas as pl
from jax.experimental.pallas import tpu as pltpu


_LANES = 128
# ---------------------------------------------------------------------------
# Packed parameter buffer (280, 128) f32 — all sections 8-row aligned,
# all lanes zero-padded to 128:
#   [  0: 16)  W1  (16,128)   l1 weight (pre-transposed (in,out)), lanes 0:25
#   [ 16:144)  W2  (128,128)  l2 weight, rows 0:25 / lanes 0:50 valid
#   [144:272)  Wh  (128,128)  fused [actor_lin1 | l3]: rows 0:50 valid,
#                             lanes 0:6 = actor_lin1, lanes 6:31 = l3
#   [272:280)  bias/aux tile (8,128):
#       row 272: b1 (lanes 0:25)        row 273: b2 (lanes 0:50)
#       row 274: bh = [ba | b3] (0:31)  row 275: critic_lin1 weight (lanes 6:31)
#       row 276: critic bias broadcast to all 128 lanes
# ---------------------------------------------------------------------------
_PACK_ROWS = 280


def actor_critic_kernel(x_ref, p_ref, out_ref):
    x = x_ref[...]                                   # (B, 16)
    B = x.shape[0]

    # F.normalize(x, dim=0): x / max(||x||_col, 1e-12) == x * rsqrt(max(ss, 1e-24))
    sumsq = jnp.sum(x * x, axis=0, keepdims=True)
    xn = x * jax.lax.rsqrt(jnp.maximum(sumsq, 1e-24))

    # One tile-aligned load for all bias / auxiliary rows.
    bias_blk = p_ref[272:280, :]                     # (8, 128)
    b1 = bias_blk[0:1, :]
    b2 = bias_blk[1:2, :]
    bh = bias_blk[2:3, :]
    wc_row = bias_blk[3:4, :]                        # critic weights in lanes 6:31
    bc_row = bias_blk[4:5, :]                        # critic bias in every lane

    # Shared trunk (full-width padded operands; padded lanes stay exactly 0).
    y = jnp.maximum(
        jnp.dot(xn, p_ref[0:16, :], preferred_element_type=jnp.float32) + b1, 0.0)
    y = jnp.maximum(
        jnp.dot(y, p_ref[16:144, :], preferred_element_type=jnp.float32) + b2, 0.0)

    # Fused heads: [actor_lin1 | l3] in one (128,128) matmul.  (y.detach() is
    # identity in the forward pass.)
    h = jnp.dot(y, p_ref[144:272, :], preferred_element_type=jnp.float32) + bh

    # Actor: log_softmax over dim=0 (batch axis), computed lane-wise over the
    # full width — lanes 0:6 are the actor output, the rest is masked away.
    m = jnp.max(h, axis=0, keepdims=True)
    shifted = h - m
    lse = jnp.log(jnp.sum(jnp.exp(shifted), axis=0, keepdims=True))
    actor_full = shifted - lse                       # (B, 128)

    # Critic: relu(l3 hidden) dotted with the critic weight row (VPU multiply +
    # lane reduce; keeps the N=1 projection off the MXU).  wc_row is zero in
    # the actor lanes and in the all-zero padded lanes, so relu(h) full-width
    # is safe.
    c = jnp.maximum(h, 0.0)
    csum = jnp.sum(c * wc_row, axis=-1, keepdims=True)        # (B, 1)
    critic_full = jnp.tanh(csum + bc_row)                     # (B, 128)

    # Single lane-dense slab: lanes 0:6 actor log-probs, lanes >= 6 critic.
    lane = jax.lax.broadcasted_iota(jnp.int32, (B, _LANES), 1)
    out_ref[...] = jnp.where(lane < 6, actor_full, critic_full)


def pack_params(params):
    """Pack (W1,b1,W2,b2,Wa,ba,W3,b3,Wc,bc) into one (280,128) f32 buffer."""
    w1, b1, w2, b2, wa, ba, w3, b3, wc, bc = params
    buf = jnp.zeros((_PACK_ROWS, _LANES), jnp.float32)
    buf = buf.at[0:16, 0:25].set(w1)                 # l1 (16,25)
    buf = buf.at[16:41, 0:50].set(w2)                # l2 (25,50)
    buf = buf.at[144:194, 0:6].set(wa)               # actor_lin1 (50,6)
    buf = buf.at[144:194, 6:31].set(w3)              # l3 (50,25)
    buf = buf.at[272, 0:25].set(b1.reshape(-1))
    buf = buf.at[273, 0:50].set(b2.reshape(-1))
    buf = buf.at[274, 0:6].set(ba.reshape(-1))
    buf = buf.at[274, 6:31].set(b3.reshape(-1))
    buf = buf.at[275, 6:31].set(wc.reshape(-1))      # critic_lin1 weight as a row
    buf = buf.at[276, :].set(jnp.broadcast_to(bc.reshape(()), (_LANES,)))
    return buf


def actor_critic_forward(x, packed_params):
    """x: (B,16) f32; packed_params: (280,128) f32.

    Returns the lane-dense (B,128) slab: lanes 0:6 actor log-probs, lane 6
    (and all lanes >= 6) the critic value.
    """
    B = x.shape[0]
    vmem_spec = pl.BlockSpec(memory_space=pltpu.MemorySpace.VMEM)
    return pl.pallas_call(
        actor_critic_kernel,
        out_shape=jax.ShapeDtypeStruct((B, _LANES), jnp.float32),
        in_specs=[vmem_spec, vmem_spec],
        out_specs=vmem_spec,
    )(x, packed_params)


def split_outputs(slab):
    """Slice the slab back into the module's (actor, critic) outputs."""
    return slab[:, 0:6], slab[:, 6:7]


def _init_linear(key, fan_in, fan_out):
    """PyTorch-style init U(-1/sqrt(fan_in), 1/sqrt(fan_in)); weight returned
    pre-transposed as (fan_in, fan_out), bias as (1, fan_out)."""
    kw, kb = jax.random.split(key)
    bound = 1.0 / jnp.sqrt(jnp.float32(fan_in))
    w = jax.random.uniform(kw, (fan_in, fan_out), jnp.float32, -bound, bound)
    b = jax.random.uniform(kb, (1, fan_out), jnp.float32, -bound, bound)
    return w, b


def _reference_forward(x, params):
    """Pure-JAX reference with identical (PyTorch) semantics."""
    w1, b1, w2, b2, wa, ba, w3, b3, wc, bc = params
    xn = x / jnp.maximum(jnp.sqrt(jnp.sum(x * x, axis=0, keepdims=True)), 1e-12)
    y = jax.nn.relu(xn @ w1 + b1)
    y = jax.nn.relu(y @ w2 + b2)
    actor = jax.nn.log_softmax(y @ wa + ba, axis=0)
    c = jax.nn.relu(y @ w3 + b3)
    critic = jnp.tanh(c @ wc + bc)
    return actor, critic


if __name__ == "__main__":
    key = jax.random.PRNGKey(0)
    kx, k1, k2, ka, k3, kc = jax.random.split(key, 6)

    # Small batch of gridworld-style 16-dim state vectors (B=8 fills one
    # sublane tile; the kernel handles arbitrary B).
    batch = 8
    x = jax.random.normal(kx, (batch, 16), dtype=jnp.float32)

    w1, b1 = _init_linear(k1, 16, 25)   # l1
    w2, b2 = _init_linear(k2, 25, 50)   # l2
    wa, ba = _init_linear(ka, 50, 6)    # actor_lin1
    w3, b3 = _init_linear(k3, 50, 25)   # l3
    wc, bc = _init_linear(kc, 25, 1)    # critic_lin1
    params = (w1, b1, w2, b2, wa, ba, w3, b3, wc, bc)

    packed = pack_params(params)
    slab = actor_critic_forward(x, packed)
    jax.block_until_ready(slab)

    actor, critic = split_outputs(slab)
    ref_actor, ref_critic = _reference_forward(x, params)
    assert actor.shape == (batch, 6) and critic.shape == (batch, 1)
    assert jnp.allclose(actor, ref_actor, atol=1e-4, rtol=1e-4)
    assert jnp.allclose(critic, ref_critic, atol=1e-4, rtol=1e-4)

    print("KERNEL_OK")
</pallas_src>

<mosaic_0001>
module attributes {stable_mosaic.version = 11 : i64} {
  func.func @actor_critic_kernel(%arg0: memref<8x16xf32, #tpu.memory_space<vmem>>, %arg1: memref<280x128xf32, #tpu.memory_space<vmem>>, %arg2: memref<8x128xf32, #tpu.memory_space<vmem>>) attributes {dimension_semantics = [], scalar_prefetch = 0 : i64, scratch_operands = 0 : i64, tpu.core_type = #tpu.core_type<tc>} {
    %c0 = arith.constant 0 : index
    %c0_0 = arith.constant 0 : index
    %0 = vector.load %arg0[%c0, %c0_0] : memref<8x16xf32, #tpu.memory_space<vmem>>, vector<8x16xf32>
    %1 = arith.mulf %0, %0 : vector<8x16xf32>
    %cst = arith.constant dense<0.000000e+00> : vector<16xf32>
    %2 = vector.multi_reduction <add>, %1, %cst [0] : vector<8x16xf32> to vector<16xf32>
    %3 = vector.shape_cast %2 : vector<16xf32> to vector<1x16xf32>
    %cst_1 = arith.constant 1.000000e-24 : f32
    %4 = vector.broadcast %cst_1 : f32 to vector<1x16xf32>
    %5 = arith.maximumf %3, %4 : vector<1x16xf32>
    %6 = math.rsqrt %5 : vector<1x16xf32>
    %7 = vector.broadcast %6 : vector<1x16xf32> to vector<8x16xf32>
    %8 = arith.mulf %0, %7 : vector<8x16xf32>
    %c272 = arith.constant 272 : index
    %c0_2 = arith.constant 0 : index
    %9 = vector.load %arg1[%c272, %c0_2] : memref<280x128xf32, #tpu.memory_space<vmem>>, vector<8x128xf32>
    %10 = vector.extract_strided_slice %9 {offsets = [0, 0], sizes = [1, 128], strides = [1, 1]} : vector<8x128xf32> to vector<1x128xf32>
    %11 = vector.extract_strided_slice %9 {offsets = [1, 0], sizes = [1, 128], strides = [1, 1]} : vector<8x128xf32> to vector<1x128xf32>
    %12 = vector.extract_strided_slice %9 {offsets = [2, 0], sizes = [1, 128], strides = [1, 1]} : vector<8x128xf32> to vector<1x128xf32>
    %13 = vector.extract_strided_slice %9 {offsets = [3, 0], sizes = [1, 128], strides = [1, 1]} : vector<8x128xf32> to vector<1x128xf32>
    %14 = vector.extract_strided_slice %9 {offsets = [4, 0], sizes = [1, 128], strides = [1, 1]} : vector<8x128xf32> to vector<1x128xf32>
    %c0_3 = arith.constant 0 : index
    %c0_4 = arith.constant 0 : index
    %15 = vector.load %arg1[%c0_3, %c0_4] : memref<280x128xf32, #tpu.memory_space<vmem>>, vector<16x128xf32>
    %cst_5 = arith.constant dense<0.000000e+00> : vector<8x128xf32>
    %16 = tpu.matmul %8, %15, %cst_5 {dimension_numbers = #tpu.dot_dimension_numbers<[1], [0], [0], [1], [0, 0, 1, 1], [], []>} : vector<8x16xf32>, vector<16x128xf32>, vector<8x128xf32> -> vector<8x128xf32>
    %17 = vector.broadcast %10 : vector<1x128xf32> to vector<8x128xf32>
    %18 = arith.addf %16, %17 : vector<8x128xf32>
    %cst_6 = arith.constant 0.000000e+00 : f32
    %19 = vector.broadcast %cst_6 : f32 to vector<8x128xf32>
    %20 = arith.maximumf %18, %19 : vector<8x128xf32>
    %c16 = arith.constant 16 : index
    %c0_7 = arith.constant 0 : index
    %21 = vector.load %arg1[%c16, %c0_7] : memref<280x128xf32, #tpu.memory_space<vmem>>, vector<128x128xf32>
    %cst_8 = arith.constant dense<0.000000e+00> : vector<8x128xf32>
    %22 = tpu.matmul %20, %21, %cst_8 {dimension_numbers = #tpu.dot_dimension_numbers<[1], [0], [0], [1], [0, 0, 1, 1], [], []>} : vector<8x128xf32>, vector<128x128xf32>, vector<8x128xf32> -> vector<8x128xf32>
    %23 = vector.broadcast %11 : vector<1x128xf32> to vector<8x128xf32>
    %24 = arith.addf %22, %23 : vector<8x128xf32>
    %cst_9 = arith.constant 0.000000e+00 : f32
    %25 = vector.broadcast %cst_9 : f32 to vector<8x128xf32>
    %26 = arith.maximumf %24, %25 : vector<8x128xf32>
    %c144 = arith.constant 144 : index
    %c0_10 = arith.constant 0 : index
    %27 = vector.load %arg1[%c144, %c0_10] : memref<280x128xf32, #tpu.memory_space<vmem>>, vector<128x128xf32>
    %cst_11 = arith.constant dense<0.000000e+00> : vector<8x128xf32>
    %28 = tpu.matmul %26, %27, %cst_11 {dimension_numbers = #tpu.dot_dimension_numbers<[1], [0], [0], [1], [0, 0, 1, 1], [], []>} : vector<8x128xf32>, vector<128x128xf32>, vector<8x128xf32> -> vector<8x128xf32>
    %29 = vector.broadcast %12 : vector<1x128xf32> to vector<8x128xf32>
    %30 = arith.addf %28, %29 : vector<8x128xf32>
    %cst_12 = arith.constant dense<0xFF800000> : vector<128xf32>
    %31 = vector.multi_reduction <maximumf>, %30, %cst_12 [0] : vector<8x128xf32> to vector<128xf32>
    %32 = vector.shape_cast %31 : vector<128xf32> to vector<1x128xf32>
    %33 = vector.broadcast %32 : vector<1x128xf32> to vector<8x128xf32>
    %34 = arith.subf %30, %33 : vector<8x128xf32>
    %35 = math.exp %34 : vector<8x128xf32>
    %cst_13 = arith.constant dense<0.000000e+00> : vector<128xf32>
    %36 = vector.multi_reduction <add>, %35, %cst_13 [0] : vector<8x128xf32> to vector<128xf32>
    %37 = vector.shape_cast %36 : vector<128xf32> to vector<1x128xf32>
    %38 = math.log %37 : vector<1x128xf32>
    %39 = vector.broadcast %38 : vector<1x128xf32> to vector<8x128xf32>
    %40 = arith.subf %34, %39 : vector<8x128xf32>
    %cst_14 = arith.constant 0.000000e+00 : f32
    %41 = vector.broadcast %cst_14 : f32 to vector<8x128xf32>
    %42 = arith.maximumf %30, %41 : vector<8x128xf32>
    %43 = vector.broadcast %13 : vector<1x128xf32> to vector<8x128xf32>
    %44 = arith.mulf %42, %43 : vector<8x128xf32>
    %cst_15 = arith.constant dense<0.000000e+00> : vector<8xf32>
    %45 = vector.multi_reduction <add>, %44, %cst_15 [1] : vector<8x128xf32> to vector<8xf32>
    %46 = vector.shape_cast %45 : vector<8xf32> to vector<8x1xf32>
    %47 = vector.broadcast %46 : vector<8x1xf32> to vector<8x128xf32>
    %48 = vector.broadcast %14 : vector<1x128xf32> to vector<8x128xf32>
    %49 = arith.addf %47, %48 : vector<8x128xf32>
    %50 = math.tanh %49 : vector<8x128xf32>
    %51 = tpu.iota {dimensions = array<i32: 1>} : vector<8x128xi32>
    %c6_i32 = arith.constant 6 : i32
    %52 = vector.broadcast %c6_i32 : i32 to vector<8x128xi32>
    %53 = arith.cmpi slt, %51, %52 : vector<8x128xi32>
    %54 = arith.select %53, %40, %50 : vector<8x128xi1>, vector<8x128xf32>
    %c0_16 = arith.constant 0 : index
    %c0_17 = arith.constant 0 : index
    %55 = vector.load %arg2[%c0_16, %c0_17] : memref<8x128xf32, #tpu.memory_space<vmem>>, vector<8x128xf32>
    tpu.vector_store %arg2[%c0_16, %c0_17], %54 {strides = array<i32>} : memref<8x128xf32, #tpu.memory_space<vmem>>, vector<8x128xf32>,
    return
  }
}

</mosaic_0001>

<llo_original>
// kernel: tpu_custom_call.1
$region0: #{tpu_custom_call.1}
  #allocation0 [shape = 'u32[]', space=smem, size = 0x4, offset = 0x4, fixed_abs, tag = 'smem constant byte address 0x4 - core index']
  #allocation1 [shape = 'u32[144,128]{1,0:T(1,128)}', space=vmem, size = 0x12000, scoped, tag = 'internal scratch']
  %s0 = inlined_call_operand.hbm [shape: f32[8,16], index: 0, kind: input, shape index: {}]
  %s1 = inlined_call_operand.hbm [shape: f32[280,128], index: 1, kind: input, shape index: {}]
  %s2 = inlined_call_operand.hbm [shape: f32[8,128], index: 2, kind: output, shape index: {}]
  %s3 = sld [smem:[#allocation0]]
  $region26: #{tpu_custom_call.1} parent=0
    _
  %s5 = ssub.s32 1, %s3
  %s6 = scalar_select 0, %s5, %s3
  $region1: #{tpu_custom_call.1} parent=0
    #allocation2 [shape = 'u8[4096]{0}', space=vmem, size = 0x1000, scoped, tag = 'input window, operand 0, single buffered']
    #allocation3 [shape = 's32[1]{0}', space=sflag, size = 0x4, scoped, tag = 'scoped memory for tpu_custom_call.1']
    #allocation4 [shape = 's32[1]{0}', space=sflag, size = 0x4, scoped, tag = 'scoped memory for tpu_custom_call.1']
    #allocation5 [shape = 'u8[143360]{0}', space=vmem, size = 0x23000, scoped, tag = 'input window, operand 1, single buffered']
    #allocation6 [shape = 's32[1]{0}', space=sflag, size = 0x4, scoped, tag = 'scoped memory for tpu_custom_call.1']
    #allocation7 [shape = 'u8[4096]{0}', space=vmem, size = 0x1000, scoped, tag = 'output window, operand 0, single buffered']
    %7 = vsyncpa [#allocation3], 0
    %8 = vsyncpa [#allocation6], 0
    %9 = vsyncpa [#allocation4], 0
    // Predicated region
    $region2: #{tpu_custom_call.1} parent=1 // pred_check
      _
    $region3: #{tpu_custom_call.1} parent=1 // pred_check_branch
      %11 = sbr.rel (0) target = $region5
    $region4: #{tpu_custom_call.1} parent=1 // pred_region
      %s13 = ssub.s32 128, 128
      %14 = vsyncadd [#allocation3], %s13
      %s16 = sshll.u32 [#allocation2], 4
      %s17 = int_to_ptr.vmem [resolvable:$true] %s16
      %19 = dma.hbm_to_vmem [thread:$0]  %s0, 128, %s17, [#allocation3]
    $region5: #{tpu_custom_call.1} parent=1 // pred_fallthru
      _
    // Predicated region
    $region6: #{tpu_custom_call.1} parent=1 // pred_check
      _
    $region7: #{tpu_custom_call.1} parent=1 // pred_check_branch
      %21 = sbr.rel (0) target = $region9
    $region8: #{tpu_custom_call.1} parent=1 // pred_region
      %s23 = ssub.s32 4480, 4480
      %24 = vsyncadd [#allocation6], %s23
      %s25 = sshll.u32 [#allocation5], 4
      %s26 = int_to_ptr.vmem [resolvable:$true] %s25
      %31 = dma.hbm_to_vmem [thread:$0]  %s1, 4480, %s26, [#allocation6], 128, 128, 8
    $region9: #{tpu_custom_call.1} parent=1 // pred_fallthru
      _
    // Predicated region
    $region10: #{tpu_custom_call.1} parent=1 // pred_check
      _
    $region11: #{tpu_custom_call.1} parent=1 // pred_check_branch
      %33 = sbr.rel (0) target = $region13
    $region12: #{tpu_custom_call.1} parent=1 // pred_region
      %34 = dma.done [#allocation3], 128
    $region13: #{tpu_custom_call.1} parent=1 // pred_fallthru
      _
    // Predicated region
    $region14: #{tpu_custom_call.1} parent=1 // pred_check
      _
    $region15: #{tpu_custom_call.1} parent=1 // pred_check_branch
      %36 = sbr.rel (0) target = $region17
    $region16: #{tpu_custom_call.1} parent=1 // pred_region
      %37 = dma.done [#allocation6], 4480
    $region17: #{tpu_custom_call.1} parent=1 // pred_fallthru
      _
    %v38 = vld [vmem:[#allocation2] sm:$0xff]
    %v39 = vmul.f32 %v38, %v38
    %vm40 = vcmask 130048
    %v41 = vsel %vm40, %v39, 0.0
    %v42 = vrot.slane %v41, 4
    %v43 = vadd.f32 %v41, %v42
    %v44 = vrot.slane %v43, 2
    %v45 = vadd.f32 %v43, %v44
    %v46 = vrot.slane %v45, 1
    %v47 = vadd.f32 %v45, %v46
    %v48 = vmax.f32 %v47, 1e-24
    %v49 = vrsqrt.pop %v48
    %v50 = vmul.f32 %v38, %v49
    %v51 = vld [vmem:[#allocation5 + $0x110] sm:$0xff]
    %v52 = vld [vmem:[#allocation5] sm:$0xff]
    %v53 = vld [vmem:[#allocation5 + $0x8] sm:$0xff]
    %v54 = vlaneseq
    %v55 = vshrl.u32 %v54, 7
    %v56 = vsub.s32 0, %v55
    %v57 = vrot.slane %v51, %v56
    %v59 = vsel %vm40, %v50, 0
    %61 = vmatprep.subr.mxu0 0.0
    %62 = vmatpush1.msra.mxu0 0.0
    %63 = vmatprep.subr.mxu0 0.0
    %64 = vmatpush1.msra.mxu0 0.0
    %65 = vmatprep.subr.mxu0 0.0
    %66 = vmatpush1.msra.mxu0 0.0
    %67 = vmatprep.subr.mxu0 0.0
    %68 = vmatpush1.msra.mxu0 0.0
    %69 = vmatprep.subr.mxu0 0.0
    %70 = vmatpush1.msra.mxu0 0.0
    %71 = vmatprep.subr.mxu0 0.0
    %72 = vmatpush1.msra.mxu0 0.0
    %73 = vmatprep.subr.mxu0 0.0
    %74 = vmatpush1.msra.mxu0 0.0
    %75 = vmatprep.subr.mxu0 0.0
    %76 = vmatpush1.msra.mxu0 0.0
    %77 = vmatprep.subr.mxu0 0.0
    %78 = vmatpush1.msra.mxu0 0.0
    %79 = vmatprep.subr.mxu0 0.0
    %80 = vmatpush1.msra.mxu0 0.0
    %81 = vmatprep.subr.mxu0 0.0
    %82 = vmatpush1.msra.mxu0 0.0
    %83 = vmatprep.subr.mxu0 0.0
    %84 = vmatpush1.msra.mxu0 0.0
    %85 = vmatprep.subr.mxu0 0.0
    %86 = vmatpush1.msra.mxu0 0.0
    %87 = vmatprep.subr.mxu0 0.0
    %88 = vmatpush1.msra.mxu0 0.0
    %89 = vmatprep.subr.mxu0 0.0
    %90 = vmatpush1.msra.mxu0 %v53
    %91 = vmatprep.subr.mxu0 0.0
    %92 = vmatpush1.msra.mxu0 %v52
    %93 = vmatprep.subr.mxu0 0.0
    %94 = vmatpush2.msra.mxu0 0.0
    %95 = vmatprep.subr.mxu0 0.0
    %96 = vmatpush2.msra.mxu0 0.0
    %97 = vmatprep.subr.mxu0 0.0
    %98 = vmatpush2.msra.mxu0 0.0
    %99 = vmatprep.subr.mxu0 0.0
    %100 = vmatpush2.msra.mxu0 0.0
    %101 = vmatprep.subr.mxu0 0.0
    %102 = vmatpush2.msra.mxu0 0.0
    %103 = vmatprep.subr.mxu0 0.0
    %104 = vmatpush2.msra.mxu0 0.0
    %105 = vmatprep.subr.mxu0 0.0
    %106 = vmatpush2.msra.mxu0 0.0
    %107 = vmatprep.subr.mxu0 0.0
    %108 = vmatpush2.msra.mxu0 0.0
    %109 = vmatprep.subr.mxu0 0.0
    %110 = vmatpush2.msra.mxu0 0.0
    %111 = vmatprep.subr.mxu0 0.0
    %112 = vmatpush2.msra.mxu0 0.0
    %113 = vmatprep.subr.mxu0 0.0
    %114 = vmatpush2.msra.mxu0 0.0
    %115 = vmatprep.subr.mxu0 0.0
    %116 = vmatpush2.msra.mxu0 0.0
    %117 = vmatprep.subr.mxu0 0.0
    %118 = vmatpush2.msra.mxu0 0.0
    %119 = vmatprep.subr.mxu0 0.0
    %120 = vmatpush2.msra.mxu0 0.0
    %121 = vmatprep.subr.mxu0 0.0
    %122 = vmatpush2.msra.mxu0 0.0
    %123 = vmatprep.subr.mxu0 0.0
    %124 = vmatpush2.msra.mxu0 0.0
    %125 = vmatprep.mubr.f32.mxu0 0.0
    %126 = vmatmul.mubr.f32.gmra.mxu0 %v59
    %v127 = vpop.f32.mrf.mxu0
    %v128 = vadd.f32 %v57, %v127
    %v129 = vpop.f32.mrf.mxu0
    %130 = vdwg.mxu0
    %v131 = vmax.f32 %v128, 0.0
    %v132 = vld [vmem:[#allocation5 + $0x10] sm:$0xff]
    %v133 = vld [vmem:[#allocation5 + $0x18] sm:$0xff]
    %v134 = vld [vmem:[#allocation5 + $0x20] sm:$0xff]
    %v135 = vld [vmem:[#allocation5 + $0x28] sm:$0xff]
    %v136 = vld [vmem:[#allocation5 + $0x30] sm:$0xff]
    %v137 = vld [vmem:[#allocation5 + $0x38] sm:$0xff]
    %v138 = vld [vmem:[#allocation5 + $0x40] sm:$0xff]
    %v139 = vld [vmem:[#allocation5 + $0x48] sm:$0xff]
    %v140 = vld [vmem:[#allocation5 + $0x50] sm:$0xff]
    %v141 = vld [vmem:[#allocation5 + $0x58] sm:$0xff]
    %v142 = vld [vmem:[#allocation5 + $0x60] sm:$0xff]
    %v143 = vld [vmem:[#allocation5 + $0x68] sm:$0xff]
    %v144 = vld [vmem:[#allocation5 + $0x70] sm:$0xff]
    %v145 = vld [vmem:[#allocation5 + $0x78] sm:$0xff]
    %v146 = vld [vmem:[#allocation5 + $0x80] sm:$0xff]
    %v147 = vld [vmem:[#allocation5 + $0x88] sm:$0xff]
    %v148 = vlaneseq
    %v149 = vshrl.u32 %v148, 7
    %v150 = vsub.s32 1, %v149
    %v151 = vrot.slane %v51, %v150
    %152 = vmatprep.subr.mxu0 0.0
    %153 = vmatpush1.msra.mxu0 %v147
    %154 = vmatprep.subr.mxu0 0.0
    %155 = vmatpush1.msra.mxu0 %v146
    %156 = vmatprep.subr.mxu0 0.0
    %157 = vmatpush1.msra.mxu0 %v145
    %158 = vmatprep.subr.mxu0 0.0
    %159 = vmatpush1.msra.mxu0 %v144
    %160 = vmatprep.subr.mxu0 0.0
    %161 = vmatpush1.msra.mxu0 %v143
    %162 = vmatprep.subr.mxu0 0.0
    %163 = vmatpush1.msra.mxu0 %v142
    %164 = vmatprep.subr.mxu0 0.0
    %165 = vmatpush1.msra.mxu0 %v141
    %166 = vmatprep.subr.mxu0 0.0
    %167 = vmatpush1.msra.mxu0 %v140
    %168 = vmatprep.subr.mxu0 0.0
    %169 = vmatpush1.msra.mxu0 %v139
    %170 = vmatprep.subr.mxu0 0.0
    %171 = vmatpush1.msra.mxu0 %v138
    %172 = vmatprep.subr.mxu0 0.0
    %173 = vmatpush1.msra.mxu0 %v137
    %174 = vmatprep.subr.mxu0 0.0
    %175 = vmatpush1.msra.mxu0 %v136
    %176 = vmatprep.subr.mxu0 0.0
    %177 = vmatpush1.msra.mxu0 %v135
    %178 = vmatprep.subr.mxu0 0.0
    %179 = vmatpush1.msra.mxu0 %v134
    %180 = vmatprep.subr.mxu0 0.0
    %181 = vmatpush1.msra.mxu0 %v133
    %182 = vmatprep.subr.mxu0 0.0
    %183 = vmatpush1.msra.mxu0 %v132
    %184 = vmatprep.subr.mxu0 0.0
    %185 = vmatpush2.msra.mxu0 0.0
    %186 = vmatprep.subr.mxu0 0.0
    %187 = vmatpush2.msra.mxu0 0.0
    %188 = vmatprep.subr.mxu0 0.0
    %189 = vmatpush2.msra.mxu0 0.0
    %190 = vmatprep.subr.mxu0 0.0
    %191 = vmatpush2.msra.mxu0 0.0
    %192 = vmatprep.subr.mxu0 0.0
    %193 = vmatpush2.msra.mxu0 0.0
    %194 = vmatprep.subr.mxu0 0.0
    %195 = vmatpush2.msra.mxu0 0.0
    %196 = vmatprep.subr.mxu0 0.0
    %197 = vmatpush2.msra.mxu0 0.0
    %198 = vmatprep.subr.mxu0 0.0
    %199 = vmatpush2.msra.mxu0 0.0
    %200 = vmatprep.subr.mxu0 0.0
    %201 = vmatpush2.msra.mxu0 0.0
    %202 = vmatprep.subr.mxu0 0.0
    %203 = vmatpush2.msra.mxu0 0.0
    %204 = vmatprep.subr.mxu0 0.0
    %205 = vmatpush2.msra.mxu0 0.0
    %206 = vmatprep.subr.mxu0 0.0
    %207 = vmatpush2.msra.mxu0 0.0
    %208 = vmatprep.subr.mxu0 0.0
    %209 = vmatpush2.msra.mxu0 0.0
    %210 = vmatprep.subr.mxu0 0.0
    %211 = vmatpush2.msra.mxu0 0.0
    %212 = vmatprep.subr.mxu0 0.0
    %213 = vmatpush2.msra.mxu0 0.0
    %214 = vmatprep.subr.mxu0 0.0
    %215 = vmatpush2.msra.mxu0 0.0
    %216 = vmatprep.mubr.f32.mxu0 0.0
    %217 = vmatmul.mubr.f32.gmra.mxu0 %v131
    %v218 = vpop.f32.mrf.mxu0
    %v219 = vadd.f32 %v151, %v218
    %v220 = vpop.f32.mrf.mxu0
    %221 = vdwg.mxu0
    %v222 = vmax.f32 %v219, 0.0
    %v223 = vld [vmem:[#allocation5 + $0x90] sm:$0xff]
    %v224 = vld [vmem:[#allocation5 + $0x98] sm:$0xff]
    %v225 = vld [vmem:[#allocation5 + $0xa0] sm:$0xff]
    %v226 = vld [vmem:[#allocation5 + $0xa8] sm:$0xff]
    %v227 = vld [vmem:[#allocation5 + $0xb0] sm:$0xff]
    %v228 = vld [vmem:[#allocation5 + $0xb8] sm:$0xff]
    %v229 = vld [vmem:[#allocation5 + $0xc0] sm:$0xff]
    %v230 = vld [vmem:[#allocation5 + $0xc8] sm:$0xff]
    %v231 = vld [vmem:[#allocation5 + $0xd0] sm:$0xff]
    %v232 = vld [vmem:[#allocation5 + $0xd8] sm:$0xff]
    %v233 = vld [vmem:[#allocation5 + $0xe0] sm:$0xff]
    %v234 = vld [vmem:[#allocation5 + $0xe8] sm:$0xff]
    %v235 = vld [vmem:[#allocation5 + $0xf0] sm:$0xff]
    %v236 = vld [vmem:[#allocation5 + $0xf8] sm:$0xff]
    %v237 = vld [vmem:[#allocation5 + $0x100] sm:$0xff]
    %v238 = vld [vmem:[#allocation5 + $0x108] sm:$0xff]
    %v239 = vlaneseq
    %v240 = vshrl.u32 %v239, 7
    %v241 = vsub.s32 2, %v240
    %v242 = vrot.slane %v51, %v241
    %243 = vmatprep.subr.mxu0 0.0
    %244 = vmatpush1.msra.mxu0 %v238
    %245 = vmatprep.subr.mxu0 0.0
    %246 = vmatpush1.msra.mxu0 %v237
    %247 = vmatprep.subr.mxu0 0.0
    %248 = vmatpush1.msra.mxu0 %v236
    %249 = vmatprep.subr.mxu0 0.0
    %250 = vmatpush1.msra.mxu0 %v235
    %251 = vmatprep.subr.mxu0 0.0
    %252 = vmatpush1.msra.mxu0 %v234
    %253 = vmatprep.subr.mxu0 0.0
    %254 = vmatpush1.msra.mxu0 %v233
    %255 = vmatprep.subr.mxu0 0.0
    %256 = vmatpush1.msra.mxu0 %v232
    %257 = vmatprep.subr.mxu0 0.0
    %258 = vmatpush1.msra.mxu0 %v231
    %259 = vmatprep.subr.mxu0 0.0
    %260 = vmatpush1.msra.mxu0 %v230
    %261 = vmatprep.subr.mxu0 0.0
    %262 = vmatpush1.msra.mxu0 %v229
    %263 = vmatprep.subr.mxu0 0.0
    %264 = vmatpush1.msra.mxu0 %v228
    %265 = vmatprep.subr.mxu0 0.0
    %266 = vmatpush1.msra.mxu0 %v227
    %267 = vmatprep.subr.mxu0 0.0
    %268 = vmatpush1.msra.mxu0 %v226
    %269 = vmatprep.subr.mxu0 0.0
    %270 = vmatpush1.msra.mxu0 %v225
    %271 = vmatprep.subr.mxu0 0.0
    %272 = vmatpush1.msra.mxu0 %v224
    %273 = vmatprep.subr.mxu0 0.0
    %274 = vmatpush1.msra.mxu0 %v223
    %275 = vmatprep.subr.mxu0 0.0
    %276 = vmatpush2.msra.mxu0 0.0
    %277 = vmatprep.subr.mxu0 0.0
    %278 = vmatpush2.msra.mxu0 0.0
    %279 = vmatprep.subr.mxu0 0.0
    %280 = vmatpush2.msra.mxu0 0.0
    %281 = vmatprep.subr.mxu0 0.0
    %282 = vmatpush2.msra.mxu0 0.0
    %283 = vmatprep.subr.mxu0 0.0
    %284 = vmatpush2.msra.mxu0 0.0
    %285 = vmatprep.subr.mxu0 0.0
    %286 = vmatpush2.msra.mxu0 0.0
    %287 = vmatprep.subr.mxu0 0.0
    %288 = vmatpush2.msra.mxu0 0.0
    %289 = vmatprep.subr.mxu0 0.0
    %290 = vmatpush2.msra.mxu0 0.0
    %291 = vmatprep.subr.mxu0 0.0
    %292 = vmatpush2.msra.mxu0 0.0
    %293 = vmatprep.subr.mxu0 0.0
    %294 = vmatpush2.msra.mxu0 0.0
    %295 = vmatprep.subr.mxu0 0.0
    %296 = vmatpush2.msra.mxu0 0.0
    %297 = vmatprep.subr.mxu0 0.0
    %298 = vmatpush2.msra.mxu0 0.0
    %299 = vmatprep.subr.mxu0 0.0
    %300 = vmatpush2.msra.mxu0 0.0
    %301 = vmatprep.subr.mxu0 0.0
    %302 = vmatpush2.msra.mxu0 0.0
    %303 = vmatprep.subr.mxu0 0.0
    %304 = vmatpush2.msra.mxu0 0.0
    %305 = vmatprep.subr.mxu0 0.0
    %306 = vmatpush2.msra.mxu0 0.0
    %307 = vmatprep.mubr.f32.mxu0 0.0
    %308 = vmatmul.mubr.f32.gmra.mxu0 %v222
    %v309 = vpop.f32.mrf.mxu0
    %v310 = vadd.f32 %v242, %v309
    %v311 = vpop.f32.mrf.mxu0
    %312 = vdwg.mxu0
    %v313 = vrot.slane %v310, 4
    %v314 = vmax.f32 %v310, %v313
    %v315 = vrot.slane %v314, 2
    %v316 = vmax.f32 %v314, %v315
    %v317 = vrot.slane %v316, 1
    %v318 = vmax.f32 %v316, %v317
    %v319 = vsub.f32 %v310, %v318
    %v320 = vmul.f32 %v319, 1.442695
    %v321 = vpow.pop %v320
    %v322 = vrot.slane %v321, 4
    %v323 = vadd.f32 %v321, %v322
    %v324 = vrot.slane %v323, 2
    %v325 = vadd.f32 %v323, %v324
    %v326 = vrot.slane %v325, 1
    %v327 = vadd.f32 %v325, %v326
    %v328 = vlog2.pop %v327
    %v329 = vmul.f32 %v328, 0.6931472
    %v330 = vsub.f32 %v319, %v329
    %v331 = vmax.f32 %v310, 0.0
    %v332 = vlaneseq
    %v333 = vshrl.u32 %v332, 7
    %v334 = vsub.s32 3, %v333
    %v335 = vrot.slane %v51, %v334
    %v336 = vmul.f32 %v331, %v335
    %337 = vadd.xlane.f32.xlu0 %v336
    %v338 = vpop.xlane.xlu0 %337
    %v339 = vlaneseq
    %v340 = vshrl.u32 %v339, 7
    %v341 = vsub.s32 4, %v340
    %v342 = vrot.slane %v51, %v341
    %v343 = vadd.f32 %v338, %v342
    %v344 = vtanh.pop %v343
    %v345 = vlaneseq
    %v346 = vand.u32 %v345, 127
    %vm347 = vcmp.lt.s32.totalorder %v346, 6
    %v348 = vsel %vm347, %v330, %v344
    %349 = vst [vmem:[#allocation7] sm:$0xff] %v348
    // Predicated region
    $region18: #{tpu_custom_call.1} parent=1 // pred_check
      _
    $region19: #{tpu_custom_call.1} parent=1 // pred_check_branch
      %351 = sbr.rel (0) target = $region21
    $region20: #{tpu_custom_call.1} parent=1 // pred_region
      %s353 = ssub.s32 128, 128
      %354 = vsyncadd [#allocation4], %s353
      %s356 = sshll.u32 [#allocation7], 4
      %s357 = int_to_ptr.vmem [resolvable:$true] %s356
      %359 = dma.vmem_to_hbm [thread:$0]  %s357, 128, %s2, [#allocation4]
    $region21: #{tpu_custom_call.1} parent=1 // pred_fallthru
      _
    // Predicated region
    $region22: #{tpu_custom_call.1} parent=1 // pred_check
      _
    $region23: #{tpu_custom_call.1} parent=1 // pred_check_branch
      %361 = sbr.rel (0) target = $region25
    $region24: #{tpu_custom_call.1} parent=1 // pred_region
      %362 = dma.done [#allocation4], 128
    $region25: #{tpu_custom_call.1} parent=1 // pred_fallthru
      _
    %363 = vsyncpa [#allocation3], 1
    %364 = vsyncpa [#allocation6], 1
    %365 = vsyncpa [#allocation4], 1

</llo_original>
